<compile_context>
chip_gen: v7x
topology: tpu7x:2x2x1
jax: 0.10.0
libtpu: 0.0.40
codegen_flags: <defaults>
</compile_context>

<pallas_src>
import functools

import jax
import jax.numpy as jnp
from jax import lax
from jax.experimental import pallas as pl
from jax.experimental.pallas import tpu as pltpu


def _round_up(x, m):
    return ((x + m - 1) // m) * m


def _suploss_kernel(anchor_ref, featT_ref, labc_ref, labr_ref, o_ref,
                    m_sc, l_sc, s_sc, c_sc, *,
                    N, tile_b, tile_n, has_pad):
    i = pl.program_id(0)        # anchor (B) tile   -- "parallel"
    j = pl.program_id(1)        # contrast (N) tile -- reduction axis, "arbitrary"
    nj = pl.num_programs(1)

    # ---- init accumulators on the first N tile of each B tile ----
    @pl.when(j == 0)
    def _():
        m_sc[...] = jnp.full_like(m_sc, -jnp.inf)
        l_sc[...] = jnp.zeros_like(l_sc)
        s_sc[...] = jnp.zeros_like(s_sc)
        c_sc[...] = jnp.zeros_like(c_sc)

    # ---- similarity tile on the MXU (bf16 in, f32 accumulate) ----
    # 1/temperature is already folded into the anchors (wrapper-side).
    adc = jnp.dot(anchor_ref[...], featT_ref[...],
                  preferred_element_type=jnp.float32)           # (tile_b, tile_n)

    # positive mask: padded columns carry a sentinel label -> never match an anchor
    # label, so no extra validity masking is needed here.
    posf = (labc_ref[...] == labr_ref[...]).astype(jnp.float32)  # (tile_b, tile_n)

    # ---- online softmax update (running max, rescaled denominator) ----
    m_prev = m_sc[...]
    m_new = jnp.maximum(m_prev, jnp.max(adc, axis=1, keepdims=True))
    alpha = jnp.exp(m_prev - m_new)
    e = jnp.exp(adc - m_new)                                     # (tile_b, tile_n)
    if has_pad:
        # Only the last N tile contains padded columns (their adc == 0); zero their
        # contribution to the denominator.  Static python branch: completely removed
        # when N % tile_n == 0; otherwise the select hides under the EUP exp above.
        col = j * tile_n + lax.broadcasted_iota(jnp.int32, (1, tile_n), 1)
        e = jnp.where(col < N, e, 0.0)

    m_sc[...] = m_new
    l_sc[...] = alpha * l_sc[...] + jnp.sum(e, axis=1, keepdims=True)
    s_sc[...] = s_sc[...] + jnp.sum(posf * adc, axis=1, keepdims=True)
    c_sc[...] = c_sc[...] + jnp.sum(posf, axis=1, keepdims=True)

    # ---- self-column (diagonal) exclusion ----
    # Fire in every N tile whose column range overlaps this B tile's row range, so the
    # correction is exact even when the diagonal straddles two N tiles (any tile_b /
    # tile_n combination).  e was added this very tile with the same m_new, so the
    # subtraction cancels the self term exactly regardless of later rescaling.
    row_lo = i * tile_b
    col_lo = j * tile_n
    diag_here = jnp.logical_and(col_lo < row_lo + tile_b, row_lo < col_lo + tile_n)

    @pl.when(diag_here)
    def _():
        rows = row_lo + lax.broadcasted_iota(jnp.int32, (tile_b, tile_n), 0)
        cols = col_lo + lax.broadcasted_iota(jnp.int32, (tile_b, tile_n), 1)
        self_f = (rows == cols).astype(jnp.float32)
        sp = self_f * posf
        l_sc[...] = l_sc[...] - jnp.sum(self_f * e, axis=1, keepdims=True)
        s_sc[...] = s_sc[...] - jnp.sum(sp * adc, axis=1, keepdims=True)
        c_sc[...] = c_sc[...] - jnp.sum(sp, axis=1, keepdims=True)

    # ---- finalize on the last N tile: per-anchor mean log-prob of positives ----
    @pl.when(j == nj - 1)
    def _():
        log_denom = jnp.log(l_sc[...] + 1e-12)
        o_ref[...] = s_sc[...] / c_sc[...] - m_sc[...] - log_denom


def sup_loss(features, labels, *, temperature=1.0, base_temperature=None, K=128,
             tile_n=1024):
    base_temperature = temperature if base_temperature is None else base_temperature
    N, D = features.shape
    B = (N - K) // 2

    # hardware-friendly padding: lanes x128
    D_pad = _round_up(D, 128)
    tile_n = min(tile_n, _round_up(N, 128))
    N_pad = _round_up(N, tile_n)

    # tile_b sets the FLOPs/byte on the streamed featT operand; pick it as large as the
    # batch allows while keeping >= 2 B tiles (megacore "parallel" axis on v7x) and
    # falling back to small multiples of 16 (bf16 sublane packing) for tiny batches.
    if B >= 1024:
        tile_b = 512
    elif B >= 512:
        tile_b = 256
    elif B >= 128:
        tile_b = 128
    else:
        tile_b = _round_up(max(B, 1), 16)
    B_pad = _round_up(B, tile_b)

    inv_temp = 1.0 / float(temperature)
    loss_scale = float(temperature) / float(base_temperature)

    # featT: cast to bf16 BEFORE pad/transpose so the one-time relayout moves half the
    # bytes.  anchors: fold 1/temperature once, in f32, then cast to bf16.
    featT = jnp.pad(features.astype(jnp.bfloat16),
                    ((0, N_pad - N), (0, D_pad - D))).T            # (D_pad, N_pad) bf16
    anchors = jnp.pad((features[:B] * inv_temp).astype(jnp.bfloat16),
                      ((0, B_pad - B), (0, D_pad - D)))            # (B_pad, D_pad) bf16

    lab = labels.reshape(-1).astype(jnp.int32)
    # padded columns get a sentinel label (max+1) that can never match an anchor label.
    sentinel = jnp.max(lab) + 1
    col_ids = jnp.arange(N_pad, dtype=jnp.int32)
    lab_row = jnp.where(col_ids < N, jnp.pad(lab, (0, N_pad - N)),
                        sentinel).reshape(1, N_pad)
    lab_col = jnp.pad(lab[:B], (0, B_pad - B)).reshape(B_pad, 1)

    nb, nn = B_pad // tile_b, N_pad // tile_n

    kernel = functools.partial(
        _suploss_kernel, N=N, tile_b=tile_b, tile_n=tile_n,
        has_pad=(N % tile_n != 0))

    mean_log_prob_pos = pl.pallas_call(
        kernel,
        out_shape=jax.ShapeDtypeStruct((B_pad, 1), jnp.float32),
        grid_spec=pltpu.PrefetchScalarGridSpec(
            num_scalar_prefetch=0,
            grid=(nb, nn),
            in_specs=[
                pl.BlockSpec((tile_b, D_pad), lambda i, j: (i, 0)),   # anchors (bf16)
                pl.BlockSpec((D_pad, tile_n), lambda i, j: (0, j)),   # features^T (bf16)
                pl.BlockSpec((tile_b, 1), lambda i, j: (i, 0)),       # anchor labels
                pl.BlockSpec((1, tile_n), lambda i, j: (0, j)),       # contrast labels
            ],
            out_specs=pl.BlockSpec((tile_b, 1), lambda i, j: (i, 0)),
            scratch_shapes=[
                pltpu.VMEM((tile_b, 1), jnp.float32),   # running max  m
                pltpu.VMEM((tile_b, 1), jnp.float32),   # denominator  l
                pltpu.VMEM((tile_b, 1), jnp.float32),   # sum(mask*logits) s
                pltpu.VMEM((tile_b, 1), jnp.float32),   # sum(mask)    count
            ],
        ),
        compiler_params=pltpu.CompilerParams(
            dimension_semantics=("parallel", "arbitrary"),
            vmem_limit_bytes=64 * 1024 * 1024),
        cost_estimate=pl.CostEstimate(
            flops=2 * B_pad * N_pad * D_pad,
            transcendentals=B_pad * N_pad,
            bytes_accessed=nb * N_pad * D_pad * 2 + B_pad * D_pad * 2
                           + (N_pad + B_pad) * 4 + B_pad * 4),
    )(anchors, featT, lab_col, lab_row)

    # TODO(synk): anchors with zero positives divide by zero (NaN), exactly like the
    # original PyTorch SupLoss; no guard added so semantics are preserved.
    return (-loss_scale) * jnp.mean(mean_log_prob_pos[:B, 0])


def sup_loss_ref(features, labels, *, temperature=1.0, base_temperature=None, K=128):
    # pure-JAX f32 reference (mirrors the PyTorch module) for sanity checking
    base_temperature = temperature if base_temperature is None else base_temperature
    N, _ = features.shape
    B = (N - K) // 2
    labels = labels.reshape(-1, 1)
    mask = (labels[:B] == labels.T).astype(jnp.float32)
    adc = (features[:B] @ features.T) / temperature
    logits = adc - jnp.max(adc, axis=1, keepdims=True)
    logits_mask = 1.0 - jnp.eye(B, N, dtype=jnp.float32)
    mask = mask * logits_mask
    exp_logits = jnp.exp(logits) * logits_mask
    log_prob = logits - jnp.log(jnp.sum(exp_logits, axis=1, keepdims=True) + 1e-12)
    mean_log_prob_pos = jnp.sum(mask * log_prob, axis=1) / jnp.sum(mask, axis=1)
    return jnp.mean(-(temperature / base_temperature) * mean_log_prob_pos)


if __name__ == "__main__":
    # Small synthetic shapes: K=8 memory-bank entries, batch_size=4 anchors,
    # N = 2*batch_size + K = 16 total features, feature dim D = 32.
    K = 8
    batch_size = 4
    N = 2 * batch_size + K
    D = 32
    temperature = 0.5

    key = jax.random.PRNGKey(0)
    feats = jax.random.normal(key, (N, D), dtype=jnp.float32)
    feats = feats / jnp.linalg.norm(feats, axis=1, keepdims=True)
    labels = jnp.arange(N, dtype=jnp.int32) % 4   # every class has positives

    loss = sup_loss(feats, labels, temperature=temperature, K=K)
    loss = jax.block_until_ready(loss)

    ref = sup_loss_ref(feats, labels, temperature=temperature, K=K)
    # bf16 MXU inputs -> small numerical difference vs the f32 reference
    assert jnp.allclose(loss, ref, atol=3e-2, rtol=3e-2), (loss, ref)

    print("KERNEL_OK")
</pallas_src>

<mosaic_0001>
module attributes {stable_mosaic.version = 11 : i64} {
  func.func @_suploss_kernel(%arg0: i32, %arg1: i32, %arg2: memref<16x128xbf16, #tpu.memory_space<vmem>>, %arg3: memref<128x128xbf16, #tpu.memory_space<vmem>>, %arg4: memref<16x1xi32, #tpu.memory_space<vmem>>, %arg5: memref<1x128xi32, #tpu.memory_space<vmem>>, %arg6: memref<16x1xf32, #tpu.memory_space<vmem>>, %arg7: memref<16x1xf32, #tpu.memory_space<vmem>>, %arg8: memref<16x1xf32, #tpu.memory_space<vmem>>, %arg9: memref<16x1xf32, #tpu.memory_space<vmem>>, %arg10: memref<16x1xf32, #tpu.memory_space<vmem>>) attributes {dimension_semantics = [#tpu.dimension_semantics<parallel>, #tpu.dimension_semantics<arbitrary>], iteration_bounds = array<i64: 1, 1>, scalar_prefetch = 0 : i64, scratch_operands = 4 : i64, tpu.core_type = #tpu.core_type<tc>, window_params = [{transform_indices = @transform_0, window_bounds = array<i64: 16, 128>}, {transform_indices = @transform_1, window_bounds = array<i64: 128, 128>}, {transform_indices = @transform_2, window_bounds = array<i64: 16, 1>}, {transform_indices = @transform_3, window_bounds = array<i64: 1, 128>}, {transform_indices = @transform_4, window_bounds = array<i64: 16, 1>}]} {
    %c0_i32 = arith.constant 0 : i32
    %0 = arith.cmpi eq, %arg1, %c0_i32 : i32
    %1 = arith.extui %0 : i1 to i32
    %c0_i32_0 = arith.constant 0 : i32
    %2 = arith.cmpi ne, %1, %c0_i32_0 : i32
    scf.if %2 {
      %cst_36 = arith.constant 0xFF800000 : f32
      %62 = vector.broadcast %cst_36 : f32 to vector<16x1xf32>
      %c0_37 = arith.constant 0 : index
      %c0_38 = arith.constant 0 : index
      %63 = vector.load %arg7[%c0_37, %c0_38] : memref<16x1xf32, #tpu.memory_space<vmem>>, vector<16x1xf32>
      tpu.vector_store %arg7[%c0_37, %c0_38], %62 {strides = array<i32>} : memref<16x1xf32, #tpu.memory_space<vmem>>, vector<16x1xf32>,
      %cst_39 = arith.constant 0.000000e+00 : f32
      %64 = vector.broadcast %cst_39 : f32 to vector<16x1xf32>
      %c0_40 = arith.constant 0 : index
      %c0_41 = arith.constant 0 : index
      %65 = vector.load %arg8[%c0_40, %c0_41] : memref<16x1xf32, #tpu.memory_space<vmem>>, vector<16x1xf32>
      tpu.vector_store %arg8[%c0_40, %c0_41], %64 {strides = array<i32>} : memref<16x1xf32, #tpu.memory_space<vmem>>, vector<16x1xf32>,
      %cst_42 = arith.constant 0.000000e+00 : f32
      %66 = vector.broadcast %cst_42 : f32 to vector<16x1xf32>
      %c0_43 = arith.constant 0 : index
      %c0_44 = arith.constant 0 : index
      %67 = vector.load %arg9[%c0_43, %c0_44] : memref<16x1xf32, #tpu.memory_space<vmem>>, vector<16x1xf32>
      tpu.vector_store %arg9[%c0_43, %c0_44], %66 {strides = array<i32>} : memref<16x1xf32, #tpu.memory_space<vmem>>, vector<16x1xf32>,
      %cst_45 = arith.constant 0.000000e+00 : f32
      %68 = vector.broadcast %cst_45 : f32 to vector<16x1xf32>
      %c0_46 = arith.constant 0 : index
      %c0_47 = arith.constant 0 : index
      %69 = vector.load %arg10[%c0_46, %c0_47] : memref<16x1xf32, #tpu.memory_space<vmem>>, vector<16x1xf32>
      tpu.vector_store %arg10[%c0_46, %c0_47], %68 {strides = array<i32>} : memref<16x1xf32, #tpu.memory_space<vmem>>, vector<16x1xf32>,
    } else {
    }
    %c0 = arith.constant 0 : index
    %c0_1 = arith.constant 0 : index
    %3 = vector.load %arg2[%c0, %c0_1] : memref<16x128xbf16, #tpu.memory_space<vmem>>, vector<16x128xbf16>
    %c0_2 = arith.constant 0 : index
    %c0_3 = arith.constant 0 : index
    %4 = vector.load %arg3[%c0_2, %c0_3] : memref<128x128xbf16, #tpu.memory_space<vmem>>, vector<128x128xbf16>
    %cst = arith.constant dense<0.000000e+00> : vector<16x128xf32>
    %5 = tpu.matmul %3, %4, %cst {dimension_numbers = #tpu.dot_dimension_numbers<[1], [0], [0], [1], [0, 0, 1, 1], [], []>} : vector<16x128xbf16>, vector<128x128xbf16>, vector<16x128xf32> -> vector<16x128xf32>
    %c0_4 = arith.constant 0 : index
    %c0_5 = arith.constant 0 : index
    %6 = vector.load %arg4[%c0_4, %c0_5] : memref<16x1xi32, #tpu.memory_space<vmem>>, vector<16x1xi32>
    %c0_6 = arith.constant 0 : index
    %c0_7 = arith.constant 0 : index
    %7 = vector.load %arg5[%c0_6, %c0_7] : memref<1x128xi32, #tpu.memory_space<vmem>>, vector<1x128xi32>
    %8 = vector.broadcast %6 : vector<16x1xi32> to vector<16x128xi32>
    %9 = vector.broadcast %7 : vector<1x128xi32> to vector<16x128xi32>
    %10 = arith.cmpi eq, %8, %9 : vector<16x128xi32>
    %11 = arith.extui %10 : vector<16x128xi1> to vector<16x128xi32>
    %12 = arith.sitofp %11 : vector<16x128xi32> to vector<16x128xf32>
    %c0_8 = arith.constant 0 : index
    %c0_9 = arith.constant 0 : index
    %13 = vector.load %arg7[%c0_8, %c0_9] : memref<16x1xf32, #tpu.memory_space<vmem>>, vector<16x1xf32>
    %cst_10 = arith.constant dense<0xFF800000> : vector<16xf32>
    %14 = vector.multi_reduction <maximumf>, %5, %cst_10 [1] : vector<16x128xf32> to vector<16xf32>
    %15 = vector.shape_cast %14 : vector<16xf32> to vector<16x1xf32>
    %16 = arith.maximumf %13, %15 : vector<16x1xf32>
    %17 = arith.subf %13, %16 : vector<16x1xf32>
    %18 = math.exp %17 : vector<16x1xf32>
    %19 = vector.broadcast %16 : vector<16x1xf32> to vector<16x128xf32>
    %20 = arith.subf %5, %19 : vector<16x128xf32>
    %21 = math.exp %20 : vector<16x128xf32>
    %c128_i32 = arith.constant 128 : i32
    %22 = arith.muli %arg1, %c128_i32 : i32
    %23 = tpu.iota {dimensions = array<i32: 1>} : vector<1x128xi32>
    %24 = vector.broadcast %22 : i32 to vector<1x128xi32>
    %25 = arith.addi %24, %23 : vector<1x128xi32>
    %c16_i32 = arith.constant 16 : i32
    %26 = vector.broadcast %c16_i32 : i32 to vector<1x128xi32>
    %27 = arith.cmpi slt, %25, %26 : vector<1x128xi32>
    %cst_11 = arith.constant 0.000000e+00 : f32
    %28 = vector.shape_cast %27 : vector<1x128xi1> to vector<1x128xi1>
    %29 = vector.broadcast %28 : vector<1x128xi1> to vector<16x128xi1>
    %30 = vector.broadcast %cst_11 : f32 to vector<16x128xf32>
    %31 = arith.select %29, %21, %30 : vector<16x128xi1>, vector<16x128xf32>
    %c0_12 = arith.constant 0 : index
    %c0_13 = arith.constant 0 : index
    %32 = vector.load %arg7[%c0_12, %c0_13] : memref<16x1xf32, #tpu.memory_space<vmem>>, vector<16x1xf32>
    tpu.vector_store %arg7[%c0_12, %c0_13], %16 {strides = array<i32>} : memref<16x1xf32, #tpu.memory_space<vmem>>, vector<16x1xf32>,
    %c0_14 = arith.constant 0 : index
    %c0_15 = arith.constant 0 : index
    %33 = vector.load %arg8[%c0_14, %c0_15] : memref<16x1xf32, #tpu.memory_space<vmem>>, vector<16x1xf32>
    %34 = arith.mulf %18, %33 : vector<16x1xf32>
    %cst_16 = arith.constant dense<0.000000e+00> : vector<16xf32>
    %35 = vector.multi_reduction <add>, %31, %cst_16 [1] : vector<16x128xf32> to vector<16xf32>
    %36 = vector.shape_cast %35 : vector<16xf32> to vector<16x1xf32>
    %37 = arith.addf %34, %36 : vector<16x1xf32>
    %c0_17 = arith.constant 0 : index
    %c0_18 = arith.constant 0 : index
    %38 = vector.load %arg8[%c0_17, %c0_18] : memref<16x1xf32, #tpu.memory_space<vmem>>, vector<16x1xf32>
    tpu.vector_store %arg8[%c0_17, %c0_18], %37 {strides = array<i32>} : memref<16x1xf32, #tpu.memory_space<vmem>>, vector<16x1xf32>,
    %c0_19 = arith.constant 0 : index
    %c0_20 = arith.constant 0 : index
    %39 = vector.load %arg9[%c0_19, %c0_20] : memref<16x1xf32, #tpu.memory_space<vmem>>, vector<16x1xf32>
    %40 = arith.mulf %12, %5 : vector<16x128xf32>
    %cst_21 = arith.constant dense<0.000000e+00> : vector<16xf32>
    %41 = vector.multi_reduction <add>, %40, %cst_21 [1] : vector<16x128xf32> to vector<16xf32>
    %42 = vector.shape_cast %41 : vector<16xf32> to vector<16x1xf32>
    %43 = arith.addf %39, %42 : vector<16x1xf32>
    %c0_22 = arith.constant 0 : index
    %c0_23 = arith.constant 0 : index
    %44 = vector.load %arg9[%c0_22, %c0_23] : memref<16x1xf32, #tpu.memory_space<vmem>>, vector<16x1xf32>
    tpu.vector_store %arg9[%c0_22, %c0_23], %43 {strides = array<i32>} : memref<16x1xf32, #tpu.memory_space<vmem>>, vector<16x1xf32>,
    %c0_24 = arith.constant 0 : index
    %c0_25 = arith.constant 0 : index
    %45 = vector.load %arg10[%c0_24, %c0_25] : memref<16x1xf32, #tpu.memory_space<vmem>>, vector<16x1xf32>
    %cst_26 = arith.constant dense<0.000000e+00> : vector<16xf32>
    %46 = vector.multi_reduction <add>, %12, %cst_26 [1] : vector<16x128xf32> to vector<16xf32>
    %47 = vector.shape_cast %46 : vector<16xf32> to vector<16x1xf32>
    %48 = arith.addf %45, %47 : vector<16x1xf32>
    %c0_27 = arith.constant 0 : index
    %c0_28 = arith.constant 0 : index
    %49 = vector.load %arg10[%c0_27, %c0_28] : memref<16x1xf32, #tpu.memory_space<vmem>>, vector<16x1xf32>
    tpu.vector_store %arg10[%c0_27, %c0_28], %48 {strides = array<i32>} : memref<16x1xf32, #tpu.memory_space<vmem>>, vector<16x1xf32>,
    %c16_i32_29 = arith.constant 16 : i32
    %50 = arith.muli %arg0, %c16_i32_29 : i32
    %c128_i32_30 = arith.constant 128 : i32
    %51 = arith.muli %arg1, %c128_i32_30 : i32
    %c16_i32_31 = arith.constant 16 : i32
    %52 = arith.addi %50, %c16_i32_31 : i32
    %53 = arith.cmpi slt, %51, %52 : i32
    %c128_i32_32 = arith.constant 128 : i32
    %54 = arith.addi %51, %c128_i32_32 : i32
    %55 = arith.cmpi slt, %50, %54 : i32
    %56 = arith.andi %53, %55 : i1
    %57 = arith.extui %56 : i1 to i32
    %c0_i32_33 = arith.constant 0 : i32
    %58 = arith.cmpi ne, %57, %c0_i32_33 : i32
    scf.if %58 {
      %62 = tpu.iota {dimensions = array<i32: 0>} : vector<16x128xi32>
      %63 = vector.broadcast %50 : i32 to vector<16x128xi32>
      %64 = arith.addi %63, %62 : vector<16x128xi32>
      %65 = tpu.iota {dimensions = array<i32: 1>} : vector<16x128xi32>
      %66 = vector.broadcast %51 : i32 to vector<16x128xi32>
      %67 = arith.addi %66, %65 : vector<16x128xi32>
      %68 = arith.cmpi eq, %64, %67 : vector<16x128xi32>
      %69 = arith.extui %68 : vector<16x128xi1> to vector<16x128xi32>
      %70 = arith.sitofp %69 : vector<16x128xi32> to vector<16x128xf32>
      %71 = arith.mulf %70, %12 : vector<16x128xf32>
      %c0_36 = arith.constant 0 : index
      %c0_37 = arith.constant 0 : index
      %72 = vector.load %arg8[%c0_36, %c0_37] : memref<16x1xf32, #tpu.memory_space<vmem>>, vector<16x1xf32>
      %73 = arith.mulf %70, %31 : vector<16x128xf32>
      %cst_38 = arith.constant dense<0.000000e+00> : vector<16xf32>
      %74 = vector.multi_reduction <add>, %73, %cst_38 [1] : vector<16x128xf32> to vector<16xf32>
      %75 = vector.shape_cast %74 : vector<16xf32> to vector<16x1xf32>
      %76 = arith.subf %72, %75 : vector<16x1xf32>
      %c0_39 = arith.constant 0 : index
      %c0_40 = arith.constant 0 : index
      %77 = vector.load %arg8[%c0_39, %c0_40] : memref<16x1xf32, #tpu.memory_space<vmem>>, vector<16x1xf32>
      tpu.vector_store %arg8[%c0_39, %c0_40], %76 {strides = array<i32>} : memref<16x1xf32, #tpu.memory_space<vmem>>, vector<16x1xf32>,
      %c0_41 = arith.constant 0 : index
      %c0_42 = arith.constant 0 : index
      %78 = vector.load %arg9[%c0_41, %c0_42] : memref<16x1xf32, #tpu.memory_space<vmem>>, vector<16x1xf32>
      %79 = arith.mulf %71, %5 : vector<16x128xf32>
      %cst_43 = arith.constant dense<0.000000e+00> : vector<16xf32>
      %80 = vector.multi_reduction <add>, %79, %cst_43 [1] : vector<16x128xf32> to vector<16xf32>
      %81 = vector.shape_cast %80 : vector<16xf32> to vector<16x1xf32>
      %82 = arith.subf %78, %81 : vector<16x1xf32>
      %c0_44 = arith.constant 0 : index
      %c0_45 = arith.constant 0 : index
      %83 = vector.load %arg9[%c0_44, %c0_45] : memref<16x1xf32, #tpu.memory_space<vmem>>, vector<16x1xf32>
      tpu.vector_store %arg9[%c0_44, %c0_45], %82 {strides = array<i32>} : memref<16x1xf32, #tpu.memory_space<vmem>>, vector<16x1xf32>,
      %c0_46 = arith.constant 0 : index
      %c0_47 = arith.constant 0 : index
      %84 = vector.load %arg10[%c0_46, %c0_47] : memref<16x1xf32, #tpu.memory_space<vmem>>, vector<16x1xf32>
      %cst_48 = arith.constant dense<0.000000e+00> : vector<16xf32>
      %85 = vector.multi_reduction <add>, %71, %cst_48 [1] : vector<16x128xf32> to vector<16xf32>
      %86 = vector.shape_cast %85 : vector<16xf32> to vector<16x1xf32>
      %87 = arith.subf %84, %86 : vector<16x1xf32>
      %c0_49 = arith.constant 0 : index
      %c0_50 = arith.constant 0 : index
      %88 = vector.load %arg10[%c0_49, %c0_50] : memref<16x1xf32, #tpu.memory_space<vmem>>, vector<16x1xf32>
      tpu.vector_store %arg10[%c0_49, %c0_50], %87 {strides = array<i32>} : memref<16x1xf32, #tpu.memory_space<vmem>>, vector<16x1xf32>,
    } else {
    }
    %c0_i32_34 = arith.constant 0 : i32
    %59 = arith.cmpi eq, %arg1, %c0_i32_34 : i32
    %60 = arith.extui %59 : i1 to i32
    %c0_i32_35 = arith.constant 0 : i32
    %61 = arith.cmpi ne, %60, %c0_i32_35 : i32
    scf.if %61 {
      %c0_36 = arith.constant 0 : index
      %c0_37 = arith.constant 0 : index
      %62 = vector.load %arg8[%c0_36, %c0_37] : memref<16x1xf32, #tpu.memory_space<vmem>>, vector<16x1xf32>
      %cst_38 = arith.constant 9.99999996E-13 : f32
      %63 = vector.broadcast %cst_38 : f32 to vector<16x1xf32>
      %64 = arith.addf %62, %63 : vector<16x1xf32>
      %65 = math.log %64 : vector<16x1xf32>
      %c0_39 = arith.constant 0 : index
      %c0_40 = arith.constant 0 : index
      %66 = vector.load %arg9[%c0_39, %c0_40] : memref<16x1xf32, #tpu.memory_space<vmem>>, vector<16x1xf32>
      %c0_41 = arith.constant 0 : index
      %c0_42 = arith.constant 0 : index
      %67 = vector.load %arg10[%c0_41, %c0_42] : memref<16x1xf32, #tpu.memory_space<vmem>>, vector<16x1xf32>
      %68 = arith.divf %66, %67 : vector<16x1xf32>
      %c0_43 = arith.constant 0 : index
      %c0_44 = arith.constant 0 : index
      %69 = vector.load %arg7[%c0_43, %c0_44] : memref<16x1xf32, #tpu.memory_space<vmem>>, vector<16x1xf32>
      %70 = arith.subf %68, %69 : vector<16x1xf32>
      %71 = arith.subf %70, %65 : vector<16x1xf32>
      %c0_45 = arith.constant 0 : index
      %c0_46 = arith.constant 0 : index
      %72 = vector.load %arg6[%c0_45, %c0_46] : memref<16x1xf32, #tpu.memory_space<vmem>>, vector<16x1xf32>
      tpu.vector_store %arg6[%c0_45, %c0_46], %71 {strides = array<i32>} : memref<16x1xf32, #tpu.memory_space<vmem>>, vector<16x1xf32>,
    } else {
    }
    return
  }
  func.func @transform_0(%arg0: i32, %arg1: i32) -> (i32, i32) {
    %c0_i32 = arith.constant 0 : i32
    %c0_i32_0 = arith.constant 0 : i32
    return %arg0, %c0_i32 : i32, i32
  }
  func.func @transform_1(%arg0: i32, %arg1: i32) -> (i32, i32) {
    %c0_i32 = arith.constant 0 : i32
    %c0_i32_0 = arith.constant 0 : i32
    return %c0_i32, %arg1 : i32, i32
  }
  func.func @transform_2(%arg0: i32, %arg1: i32) -> (i32, i32) {
    %c0_i32 = arith.constant 0 : i32
    %c0_i32_0 = arith.constant 0 : i32
    return %arg0, %c0_i32 : i32, i32
  }
  func.func @transform_3(%arg0: i32, %arg1: i32) -> (i32, i32) {
    %c0_i32 = arith.constant 0 : i32
    %c0_i32_0 = arith.constant 0 : i32
    return %c0_i32, %arg1 : i32, i32
  }
  func.func @transform_4(%arg0: i32, %arg1: i32) -> (i32, i32) {
    %c0_i32 = arith.constant 0 : i32
    %c0_i32_0 = arith.constant 0 : i32
    return %arg0, %c0_i32 : i32, i32
  }
}

</mosaic_0001>

<llo_original>
// kernel: tpu_custom_call.1
$region0: #{tpu_custom_call.1}
  #allocation0 [shape = 'u32[]', space=smem, size = 0x4, offset = 0x4, fixed_abs, tag = 'smem constant byte address 0x4 - core index']
  #allocation1 [shape = 'u32[144,128]{1,0:T(1,128)}', space=vmem, size = 0x12000, scoped, tag = 'internal scratch']
  #allocation2 [shape = 'f32[16,1]{1,0:T(8,128)}', space=vmem, size = 0x2000, scoped, tag = 'scratch operand']
  #allocation3 [shape = 'f32[16,1]{1,0:T(8,128)}', space=vmem, size = 0x2000, scoped, tag = 'scratch operand']
  #allocation4 [shape = 'f32[16,1]{1,0:T(8,128)}', space=vmem, size = 0x2000, scoped, tag = 'scratch operand']
  #allocation5 [shape = 'f32[16,1]{1,0:T(8,128)}', space=vmem, size = 0x2000, scoped, tag = 'scratch operand']
  %s0 = inlined_call_operand.hbm [shape: bf16[16,128], index: 0, kind: input, shape index: {}]
  %s1 = inlined_call_operand.hbm [shape: bf16[128,128], index: 1, kind: input, shape index: {}]
  %s2 = inlined_call_operand.hbm [shape: s32[16,1], index: 2, kind: input, shape index: {}]
  %s3 = inlined_call_operand.hbm [shape: s32[1,128], index: 3, kind: input, shape index: {}]
  %s4 = inlined_call_operand.hbm [shape: f32[16,1], index: 4, kind: output, shape index: {}]
  %s5 = sld [smem:[#allocation0]]
  $region54: #{tpu_custom_call.1} parent=0
    _
  %s7 = ssub.s32 1, %s5
  %s8 = scalar_select 0, %s7, %s5
  $region1: #{tpu_custom_call.1} parent=0
    #allocation6 [shape = 'u8[4096]{0}', space=vmem, size = 0x1000, scoped, tag = 'input window, operand 0, single buffered']
    #allocation7 [shape = 's32[1]{0}', space=sflag, size = 0x4, scoped, tag = 'scoped memory for tpu_custom_call.1']
    #allocation8 [shape = 's32[1]{0}', space=sflag, size = 0x4, scoped, tag = 'scoped memory for tpu_custom_call.1']
    #allocation9 [shape = 'u8[32768]{0}', space=vmem, size = 0x8000, scoped, tag = 'input window, operand 1, single buffered']
    #allocation10 [shape = 's32[1]{0}', space=sflag, size = 0x4, scoped, tag = 'scoped memory for tpu_custom_call.1']
    #allocation11 [shape = 'u8[8192]{0}', space=vmem, size = 0x2000, scoped, tag = 'input window, operand 2, single buffered']
    #allocation12 [shape = 'u8[512]{0}', space=vmem, size = 0x400, scoped, tag = 'input window, operand 3, single buffered']
    #allocation13 [shape = 's32[1]{0}', space=sflag, size = 0x4, scoped, tag = 'scoped memory for tpu_custom_call.1']
    #allocation14 [shape = 'u8[8192]{0}', space=vmem, size = 0x2000, scoped, tag = 'output window, operand 0, single buffered']
    %9 = vsyncpa [#allocation7], 0
    %10 = vsyncpa [#allocation10], 0
    %11 = vsyncpa [#allocation13], 0
    %12 = vsyncpa [#allocation8], 0
    // Predicated region
    $region2: #{tpu_custom_call.1} parent=1 // pred_check
      _
    $region3: #{tpu_custom_call.1} parent=1 // pred_check_branch
      %14 = sbr.rel (0) target = $region5
    $region4: #{tpu_custom_call.1} parent=1 // pred_region
      %s16 = ssub.s32 128, 128
      %17 = vsyncadd [#allocation7], %s16
      %s18 = sshll.u32 [#allocation6], 4
      %s19 = int_to_ptr.vmem [resolvable:$true] %s18
      %24 = dma.hbm_to_vmem [thread:$0]  %s0, 128, %s19, [#allocation7], 64, 64, 4
    $region5: #{tpu_custom_call.1} parent=1 // pred_fallthru
      _
    // Predicated region
    $region6: #{tpu_custom_call.1} parent=1 // pred_check
      _
    $region7: #{tpu_custom_call.1} parent=1 // pred_check_branch
      %26 = sbr.rel (0) target = $region9
    $region8: #{tpu_custom_call.1} parent=1 // pred_region
      %s28 = ssub.s32 1024, 1024
      %29 = vsyncadd [#allocation10], %s28
      %s30 = sshll.u32 [#allocation9], 4
      %s31 = int_to_ptr.vmem [resolvable:$true] %s30
      %36 = dma.hbm_to_vmem [thread:$0]  %s1, 1024, %s31, [#allocation10], 64, 64, 4
    $region9: #{tpu_custom_call.1} parent=1 // pred_fallthru
      _
    // Predicated region
    $region10: #{tpu_custom_call.1} parent=1 // pred_check
      _
    $region11: #{tpu_custom_call.1} parent=1 // pred_check_branch
      %38 = sbr.rel (0) target = $region13
    $region12: #{tpu_custom_call.1} parent=1 // pred_region
      %s40 = ssub.s32 256, 256
      %41 = vsyncadd [#allocation10], %s40
      %s42 = sshll.u32 [#allocation11], 4
      %s43 = int_to_ptr.vmem [resolvable:$true] %s42
      %48 = dma.hbm_to_vmem [thread:$0]  %s2, 256, %s43, [#allocation10], 128, 128, 8
    $region13: #{tpu_custom_call.1} parent=1 // pred_fallthru
      _
    // Predicated region
    $region14: #{tpu_custom_call.1} parent=1 // pred_check
      _
    $region15: #{tpu_custom_call.1} parent=1 // pred_check_branch
      %50 = sbr.rel (0) target = $region17
    $region16: #{tpu_custom_call.1} parent=1 // pred_region
      %s52 = ssub.s32 16, 16
      %53 = vsyncadd [#allocation13], %s52
      %s55 = sshll.u32 [#allocation12], 4
      %s56 = int_to_ptr.vmem [resolvable:$true] %s55
      %58 = dma.hbm_to_vmem [thread:$0]  %s3, 16, %s56, [#allocation13]
    $region17: #{tpu_custom_call.1} parent=1 // pred_fallthru
      _
    // Predicated region
    $region18: #{tpu_custom_call.1} parent=1 // pred_check
      _
    $region19: #{tpu_custom_call.1} parent=1 // pred_check_branch
      %60 = sbr.rel (0) target = $region21
    $region20: #{tpu_custom_call.1} parent=1 // pred_region
      %61 = dma.done [#allocation7], 128
    $region21: #{tpu_custom_call.1} parent=1 // pred_fallthru
      _
    // Predicated region
    $region22: #{tpu_custom_call.1} parent=1 // pred_check
      _
    $region23: #{tpu_custom_call.1} parent=1 // pred_check_branch
      %63 = sbr.rel (0) target = $region25
    $region24: #{tpu_custom_call.1} parent=1 // pred_region
      %64 = dma.done [#allocation10], 1024
    $region25: #{tpu_custom_call.1} parent=1 // pred_fallthru
      _
    // Predicated region
    $region26: #{tpu_custom_call.1} parent=1 // pred_check
      _
    $region27: #{tpu_custom_call.1} parent=1 // pred_check_branch
      %66 = sbr.rel (0) target = $region29
    $region28: #{tpu_custom_call.1} parent=1 // pred_region
      %67 = dma.done [#allocation10], 256
    $region29: #{tpu_custom_call.1} parent=1 // pred_fallthru
      _
    // Predicated region
    $region30: #{tpu_custom_call.1} parent=1 // pred_check
      _
    $region31: #{tpu_custom_call.1} parent=1 // pred_check_branch
      %69 = sbr.rel (0) target = $region33
    $region32: #{tpu_custom_call.1} parent=1 // pred_region
      %70 = dma.done [#allocation13], 16
    $region33: #{tpu_custom_call.1} parent=1 // pred_fallthru
      _
    %p72 = scmp.eq.s32.totalorder 0, 0
    // Predicated region
    $region34: #{tpu_custom_call.1} parent=1 // pred_check
      %p73 = pneg %p72
    $region35: #{tpu_custom_call.1} parent=1 // pred_check_branch
      %75 = sbr.rel (%p73) target = $region37
    $region36: #{tpu_custom_call.1} parent=1 // pred_region
      %vm76 = vcmask 7168
      %77 = vst.msk [vmem:[#allocation2] sm:$0xff] %vm76, -inf
      %78 = vst.msk [vmem:[#allocation2 + $0x8] sm:$0xff] %vm76, -inf
      %79 = vst.msk [vmem:[#allocation3] sm:$0xff] %vm76, 0.0
      %80 = vst.msk [vmem:[#allocation3 + $0x8] sm:$0xff] %vm76, 0.0
      %81 = vst.msk [vmem:[#allocation4] sm:$0xff] %vm76, 0.0
      %82 = vst.msk [vmem:[#allocation4 + $0x8] sm:$0xff] %vm76, 0.0
      %83 = vst.msk [vmem:[#allocation5] sm:$0xff] %vm76, 0.0
      %84 = vst.msk [vmem:[#allocation5 + $0x8] sm:$0xff] %vm76, 0.0
    $region37: #{tpu_custom_call.1} parent=1 // pred_fallthru
      _
    %v85 = vld [vmem:[#allocation6] sm:$0xf]
    %v86 = vld [vmem:[#allocation6 + $0x4] sm:$0xf]
    %v87 = vld [vmem:[#allocation9] sm:$0xf]
    %v88 = vld [vmem:[#allocation9 + $0x4] sm:$0xf]
    %v89 = vld [vmem:[#allocation9 + $0x8] sm:$0xf]
    %v90 = vld [vmem:[#allocation9 + $0xc] sm:$0xf]
    %v91 = vld [vmem:[#allocation9 + $0x10] sm:$0xf]
    %v92 = vld [vmem:[#allocation9 + $0x14] sm:$0xf]
    %v93 = vld [vmem:[#allocation9 + $0x18] sm:$0xf]
    %v94 = vld [vmem:[#allocation9 + $0x1c] sm:$0xf]
    %v95 = vld [vmem:[#allocation9 + $0x20] sm:$0xf]
    %v96 = vld [vmem:[#allocation9 + $0x24] sm:$0xf]
    %v97 = vld [vmem:[#allocation9 + $0x28] sm:$0xf]
    %v98 = vld [vmem:[#allocation9 + $0x2c] sm:$0xf]
    %v99 = vld [vmem:[#allocation9 + $0x30] sm:$0xf]
    %v100 = vld [vmem:[#allocation9 + $0x34] sm:$0xf]
    %v101 = vld [vmem:[#allocation9 + $0x38] sm:$0xf]
    %v102 = vld [vmem:[#allocation9 + $0x3c] sm:$0xf]
    %v105 = vunpack.c.l.b16 %v85
    %v106 = vunpack.c.l.b16 %v86
    %v107 = vpack.c.b16 %v106, %v105
    %v125 = vunpack.c.l.b16 %v87
    %v126 = vunpack.c.l.b16 %v88
    %v127 = vunpack.c.l.b16 %v89
    %v128 = vunpack.c.l.b16 %v90
    %v129 = vunpack.c.l.b16 %v91
    %v130 = vunpack.c.l.b16 %v92
    %v131 = vunpack.c.l.b16 %v93
    %v132 = vunpack.c.l.b16 %v94
    %v133 = vunpack.c.l.b16 %v95
    %v134 = vunpack.c.l.b16 %v96
    %v135 = vunpack.c.l.b16 %v97
    %v136 = vunpack.c.l.b16 %v98
    %v137 = vunpack.c.l.b16 %v99
    %v138 = vunpack.c.l.b16 %v100
    %v139 = vunpack.c.l.b16 %v101
    %v140 = vunpack.c.l.b16 %v102
    %v141 = vpack.c.b16 %v126, %v125
    %v142 = vpack.c.b16 %v128, %v127
    %v143 = vpack.c.b16 %v130, %v129
    %v144 = vpack.c.b16 %v132, %v131
    %v145 = vpack.c.b16 %v134, %v133
    %v146 = vpack.c.b16 %v136, %v135
    %v147 = vpack.c.b16 %v138, %v137
    %v148 = vpack.c.b16 %v140, %v139
    %157 = vmatprep.subr.bf16.mxu0 0
    %158 = vmatpush1.bf16.msra.mxu0 %v141
    %159 = vmatprep.subr.bf16.mxu0 0
    %160 = vmatpush1.bf16.msra.mxu0 %v142
    %161 = vmatprep.subr.bf16.mxu0 0
    %162 = vmatpush1.bf16.msra.mxu0 %v143
    %163 = vmatprep.subr.bf16.mxu0 0
    %164 = vmatpush1.bf16.msra.mxu0 %v144
    %165 = vmatprep.subr.bf16.mxu0 0
    %166 = vmatpush1.bf16.msra.mxu0 %v145
    %167 = vmatprep.subr.bf16.mxu0 0
    %168 = vmatpush1.bf16.msra.mxu0 %v146
    %169 = vmatprep.subr.bf16.mxu0 0
    %170 = vmatpush1.bf16.msra.mxu0 %v147
    %171 = vmatprep.subr.bf16.mxu0 0
    %172 = vmatpush1.bf16.msra.mxu0 %v148
    %173 = vmatprep.subr.bf16.mxu0 0
    %174 = vmatpush1.bf16.msra.mxu0 0
    %175 = vmatprep.subr.bf16.mxu0 0
    %176 = vmatpush1.bf16.msra.mxu0 0
    %177 = vmatprep.subr.bf16.mxu0 0
    %178 = vmatpush1.bf16.msra.mxu0 0
    %179 = vmatprep.subr.bf16.mxu0 0
    %180 = vmatpush1.bf16.msra.mxu0 0
    %181 = vmatprep.subr.bf16.mxu0 0
    %182 = vmatpush1.bf16.msra.mxu0 0
    %183 = vmatprep.subr.bf16.mxu0 0
    %184 = vmatpush1.bf16.msra.mxu0 0
    %185 = vmatprep.subr.bf16.mxu0 0
    %186 = vmatpush1.bf16.msra.mxu0 0
    %187 = vmatprep.subr.bf16.mxu0 0
    %188 = vmatpush1.bf16.msra.mxu0 0
    %189 = vmatprep.mubr.bf16.mxu0 0
    %190 = vmatmul.mubr.bf16.gmra.mrb[0].mxu0 %v107
    %v191 = vpop.f32.mrb[0].mxu0
    %v192 = vadd.f32 0.0, %v191
    %v193 = vpop.f32.mrb[0].mxu0
    %v194 = vpop.f32.mrb[0].mxu0
    %v195 = vadd.f32 0.0, %v194
    %v196 = vpop.f32.mrb[0].mxu0
    %197 = vdwg.mxu0
    %v198 = vld [vmem:[#allocation11] sm:$0xff]
    %v199 = vld [vmem:[#allocation11 + $0x8] sm:$0xff]
    %v200 = vld [vmem:[#allocation12] sm:$0x1]
    %201 = vset.pattern.permute.xlu0 0
    %202 = vperm.xlu0 %201, %v198
    %v203 = vpop.permute.xlu0 %202
    %204 = vset.pattern.permute.xlu0 0
    %205 = vperm.xlu0 %204, %v199
    %v206 = vpop.permute.xlu0 %205
    %v207 = vlaneseq
    %v208 = vshrl.u32 %v207, 7
    %v209 = vsub.s32 0, %v208
    %v210 = vrot.slane %v200, %v209
    %vm211 = vcmp.eq.s32.totalorder %v203, %v210
    %vm212 = vcmp.eq.s32.totalorder %v206, %v210
    %v213 = vsel %vm211, 1, 0
    %v214 = vsel %vm212, 1, 0
    %v215 = vcvt.s32.f32 %v213
    %v216 = vcvt.s32.f32 %v214
    %v217 = vld [vmem:[#allocation2] sm:$0xff]
    %v218 = vld [vmem:[#allocation2 + $0x8] sm:$0xff]
    %219 = vmax.xlane.f32.xlu0 %v192
    %v220 = vpop.xlane.xlu0 %219
    %221 = vmax.xlane.f32.xlu0 %v195
    %v222 = vpop.xlane.xlu0 %221
    %v223 = vmax.f32 %v217, %v220
    %v224 = vmax.f32 %v218, %v222
    %v225 = vsub.f32 %v217, %v223
    %v226 = vsub.f32 %v218, %v224
    %v227 = vmul.f32 %v225, 1.442695
    %v228 = vpow.pop %v227
    %v229 = vmul.f32 %v226, 1.442695
    %v230 = vpow.pop %v229
    %232 = vset.pattern.permute.xlu0 0
    %233 = vperm.xlu0 %232, %v223
    %v234 = vpop.permute.xlu0 %233
    %237 = vset.pattern.permute.xlu0 0
    %238 = vperm.xlu0 %237, %v224
    %v239 = vpop.permute.xlu0 %238
    %v241 = vsub.f32 %v192, %v234
    %v242 = vsub.f32 %v195, %v239
    %v243 = vmul.f32 %v241, 1.442695
    %v244 = vpow.pop %v243
    %v245 = vmul.f32 %v242, 1.442695
    %v246 = vpow.pop %v245
    %s247 = smul.u32 0, 128
    %v248 = vlaneseq
    %v249 = vand.u32 %v248, 127
    %v250 = vstv %s247
    %v251 = vadd.s32 %v250, %v249
    %vm252 = vcmp.lt.s32.totalorder %v251, 16
    %v253 = vsel %vm252, 1, 0
    %vm254 = vcmp.eq.s32.totalorder %v253, 1
    %v255 = vsel %vm254, %v244, 0.0
    %v256 = vsel %vm254, %v246, 0.0
    %vm257 = vcmask 7168
    %258 = vst.msk [vmem:[#allocation2] sm:$0xff] %vm257, %v223
    %259 = vst.msk [vmem:[#allocation2 + $0x8] sm:$0xff] %vm257, %v224
    %v260 = vld [vmem:[#allocation3] sm:$0xff]
    %v261 = vld [vmem:[#allocation3 + $0x8] sm:$0xff]
    %v262 = vmul.f32 %v228, %v260
    %v263 = vmul.f32 %v230, %v261
    %264 = vadd.xlane.f32.xlu0 %v255
    %v265 = vpop.xlane.xlu0 %264
    %266 = vadd.xlane.f32.xlu0 %v256
    %v267 = vpop.xlane.xlu0 %266
    %v268 = vadd.f32 %v262, %v265
    %v269 = vadd.f32 %v263, %v267
    %270 = vst.msk [vmem:[#allocation3] sm:$0xff] %vm257, %v268
    %271 = vst.msk [vmem:[#allocation3 + $0x8] sm:$0xff] %vm257, %v269
    %v272 = vld [vmem:[#allocation4] sm:$0xff]
    %v273 = vld [vmem:[#allocation4 + $0x8] sm:$0xff]
    %v274 = vmul.f32 %v215, %v192
    %v275 = vmul.f32 %v216, %v195
    %276 = vadd.xlane.f32.xlu0 %v274
    %v277 = vpop.xlane.xlu0 %276
    %278 = vadd.xlane.f32.xlu0 %v275
    %v279 = vpop.xlane.xlu0 %278
    %v280 = vadd.f32 %v272, %v277
    %v281 = vadd.f32 %v273, %v279
    %282 = vst.msk [vmem:[#allocation4] sm:$0xff] %vm257, %v280
    %283 = vst.msk [vmem:[#allocation4 + $0x8] sm:$0xff] %vm257, %v281
    %v284 = vld [vmem:[#allocation5] sm:$0xff]
    %v285 = vld [vmem:[#allocation5 + $0x8] sm:$0xff]
    %286 = vadd.xlane.f32.xlu0 %v215
    %v287 = vpop.xlane.xlu0 %286
    %288 = vadd.xlane.f32.xlu0 %v216
    %v289 = vpop.xlane.xlu0 %288
    %v290 = vadd.f32 %v284, %v287
    %v291 = vadd.f32 %v285, %v289
    %292 = vst.msk [vmem:[#allocation5] sm:$0xff] %vm257, %v290
    %293 = vst.msk [vmem:[#allocation5 + $0x8] sm:$0xff] %vm257, %v291
    %s294 = smul.u32 0, 16
    %s295 = sadd.s32 %s294, 16
    %p296 = scmp.lt.s32.totalorder %s247, %s295
    %s297 = sadd.s32 %s247, 128
    %p298 = scmp.lt.s32.totalorder %s294, %s297
    %p299 = pnand %p296, %p298
    %p300 = pneg %p299
    // Predicated region
    $region38: #{tpu_custom_call.1} parent=1 // pred_check
      _
    $region39: #{tpu_custom_call.1} parent=1 // pred_check_branch
      %302 = sbr.rel (%p299) target = $region41
    $region40: #{tpu_custom_call.1} parent=1 // pred_region
      %v303 = vlaneseq
      %v304 = vshrl.u32 %v303, 7
      %v305 = vadd.s32 %v304, 8
      %v306 = vstv %s294
      %v307 = vadd.s32 %v306, %v304
      %v308 = vadd.s32 %v306, %v305
      %vm309 = vcmp.eq.s32.totalorder %v307, %v251
      %vm310 = vcmp.eq.s32.totalorder %v308, %v251
      %v311 = vsel %vm309, 1, 0
      %v312 = vsel %vm310, 1, 0
      %v313 = vcvt.s32.f32 %v311
      %v314 = vcvt.s32.f32 %v312
      %v315 = vmul.f32 %v313, %v215
      %v316 = vmul.f32 %v314, %v216
      %v317 = vld [vmem:[#allocation3] sm:$0xff]
      %v318 = vld [vmem:[#allocation3 + $0x8] sm:$0xff]
      %v319 = vmul.f32 %v313, %v255
      %v320 = vmul.f32 %v314, %v256
      %321 = vadd.xlane.f32.xlu0 %v319
      %v322 = vpop.xlane.xlu0 %321
      %323 = vadd.xlane.f32.xlu0 %v320
      %v324 = vpop.xlane.xlu0 %323
      %v325 = vsub.f32 %v317, %v322
      %v326 = vsub.f32 %v318, %v324
      %327 = vst.msk [vmem:[#allocation3] sm:$0xff] %vm257, %v325
      %328 = vst.msk [vmem:[#allocation3 + $0x8] sm:$0xff] %vm257, %v326
      %v329 = vld [vmem:[#allocation4] sm:$0xff]
      %v330 = vld [vmem:[#allocation4 + $0x8] sm:$0xff]
      %v331 = vmul.f32 %v315, %v192
      %v332 = vmul.f32 %v316, %v195
      %333 = vadd.xlane.f32.xlu0 %v331
      %v334 = vpop.xlane.xlu0 %333
      %335 = vadd.xlane.f32.xlu0 %v332
      %v336 = vpop.xlane.xlu0 %335
      %v337 = vsub.f32 %v329, %v334
      %v338 = vsub.f32 %v330, %v336
      %339 = vst.msk [vmem:[#allocation4] sm:$0xff] %vm257, %v337
      %340 = vst.msk [vmem:[#allocation4 + $0x8] sm:$0xff] %vm257, %v338
      %v341 = vld [vmem:[#allocation5] sm:$0xff]
      %v342 = vld [vmem:[#allocation5 + $0x8] sm:$0xff]
      %343 = vadd.xlane.f32.xlu0 %v315
      %v344 = vpop.xlane.xlu0 %343
      %345 = vadd.xlane.f32.xlu0 %v316
      %v346 = vpop.xlane.xlu0 %345
      %v347 = vsub.f32 %v341, %v344
      %v348 = vsub.f32 %v342, %v346
      %349 = vst.msk [vmem:[#allocation5] sm:$0xff] %vm257, %v347
      %350 = vst.msk [vmem:[#allocation5 + $0x8] sm:$0xff] %vm257, %v348
    $region41: #{tpu_custom_call.1} parent=1 // pred_fallthru
      _
    // Predicated region
    $region42: #{tpu_custom_call.1} parent=1 // pred_check
      %p351 = pneg %p72
    $region43: #{tpu_custom_call.1} parent=1 // pred_check_branch
      %353 = sbr.rel (%p351) target = $region45
    $region44: #{tpu_custom_call.1} parent=1 // pred_region
      %v354 = vld [vmem:[#allocation3] sm:$0xff]
      %v355 = vld [vmem:[#allocation3 + $0x8] sm:$0xff]
      %v356 = vadd.f32 %v354, 1e-12
      %v357 = vadd.f32 %v355, 1e-12
      %v358 = vlog2.pop %v356
      %v359 = vmul.f32 %v358, 0.6931472
      %v360 = vlog2.pop %v357
      %v361 = vmul.f32 %v360, 0.6931472
      %v362 = vld [vmem:[#allocation4] sm:$0xff]
      %v363 = vld [vmem:[#allocation4 + $0x8] sm:$0xff]
      %v364 = vld [vmem:[#allocation5] sm:$0xff]
      %v365 = vld [vmem:[#allocation5 + $0x8] sm:$0xff]
      %v366 = vrcp.pop %v364
      %v367 = vmul.f32 %v362, %v366
      %v368 = vrcp.pop %v365
      %v369 = vmul.f32 %v363, %v368
      %v370 = vld [vmem:[#allocation2] sm:$0xff]
      %v371 = vld [vmem:[#allocation2 + $0x8] sm:$0xff]
      %v372 = vsub.f32 %v367, %v370
      %v373 = vsub.f32 %v369, %v371
      %v374 = vsub.f32 %v372, %v359
      %v375 = vsub.f32 %v373, %v361
      %376 = vst.msk [vmem:[#allocation14] sm:$0xff] %vm257, %v374
      %377 = vst.msk [vmem:[#allocation14 + $0x8] sm:$0xff] %vm257, %v375
    $region45: #{tpu_custom_call.1} parent=1 // pred_fallthru
      _
    // Predicated region
    $region46: #{tpu_custom_call.1} parent=1 // pred_check
      _
    $region47: #{tpu_custom_call.1} parent=1 // pred_check_branch
      %379 = sbr.rel (0) target = $region49
    $region48: #{tpu_custom_call.1} parent=1 // pred_region
      %s381 = ssub.s32 256, 256
      %382 = vsyncadd [#allocation8], %s381
      %s383 = sshll.u32 [#allocation14], 4
      %s384 = int_to_ptr.vmem [resolvable:$true] %s383
      %389 = dma.vmem_to_hbm [thread:$0]  %s384, 256, %s4, [#allocation8], 128, 128, 8
    $region49: #{tpu_custom_call.1} parent=1 // pred_fallthru
      _
    // Predicated region
    $region50: #{tpu_custom_call.1} parent=1 // pred_check
      _
    $region51: #{tpu_custom_call.1} parent=1 // pred_check_branch
      %391 = sbr.rel (0) target = $region53
    $region52: #{tpu_custom_call.1} parent=1 // pred_region
      %392 = dma.done [#allocation8], 256
    $region53: #{tpu_custom_call.1} parent=1 // pred_fallthru
      _
    %393 = vsyncpa [#allocation7], 1
    %394 = vsyncpa [#allocation10], 1
    %395 = vsyncpa [#allocation13], 1
    %396 = vsyncpa [#allocation8], 1

</llo_original>
